<compile_context>
chip_gen: v5e
topology: v5e:2x2
jax: 0.10.0
libtpu: 0.0.40
codegen_flags: <defaults>
</compile_context>

<pallas_src>
import functools
import jax
import jax.numpy as jnp
from jax import lax
from jax.experimental import pallas as pl
from jax.experimental.pallas import tpu as pltpu


def temporal_block_kernel(x_ref, w1_ref, b1_ref, w2_ref, b2_ref, w3_ref, b3_ref,
                          o_ref, *, K, dilation, pad, matmul_dtype):
    """One batch-block (Nb samples) per grid step.

    x_ref : (Nb, L, Cin)      un-padded input block (NLC: channels on the lane axis)
    w1_ref: (K*Cin, Cp)       conv1 im2col weights (weight-normed, K-major rows)
    w2_ref: (K*Cp,  Cp)       conv2 weights, K-major row blocks of size Cp
    w3_ref: (Cin, Cp)         conv3 (1x1) weights
    b*_ref: (1, Cp)           biases (f32, zero in padded lanes)
    o_ref : (Nb, L, Cp)       lane-dense output block (Cp multiple of 128)
    """
    nb, L, cin = x_ref.shape
    cp = o_ref.shape[-1]
    M = nb * L

    # Load + cast the MXU operand dtype exactly once; reused by conv1 and the residual.
    x = x_ref[...].astype(matmul_dtype)                    # (Nb, L, Cin)

    def shift_time(t, off):
        # s[:, i, :] = t[:, i+off, :] if 0 <= i+off < L else 0 (conv zero padding),
        # built in registers -- no padded HBM copy of the activations.
        nb_, l_, c_ = t.shape
        if off == 0:
            return t
        if abs(off) >= l_:
            return jnp.zeros_like(t)
        z = jnp.zeros((nb_, abs(off), c_), t.dtype)
        if off > 0:
            return jnp.concatenate([t[:, off:, :], z], axis=1)
        return jnp.concatenate([z, t[:, :l_ + off, :]], axis=1)

    # ---- conv1 + bias + ReLU (dropout1 = identity at inference) -------------------
    # Input channels are narrow, so gather the K dilated taps along the lane axis and
    # do a single (M, K*Cin) @ (K*Cin, Cp) MXU call. (For wide inputs, use the same
    # K-accumulating-matmul form as conv2 below.)
    cols = [shift_time(x, k * dilation - pad) for k in range(K)]
    xi = cols[0] if K == 1 else jnp.concatenate(cols, axis=-1)
    h1 = jnp.maximum(
        jnp.dot(xi.reshape(M, K * cin), w1_ref[...],
                preferred_element_type=jnp.float32) + b1_ref[...], 0.0)   # (M, Cp) f32

    # ---- conv2 + bias + ReLU (dropout2 = identity) ---------------------------------
    # Zero-rim h1 along time once, then K accumulating matmuls over time-shifted slices:
    # each tap has a lane-dense contraction of Cp (>=128). No (M, K*Cp) concat.
    h1_3d = h1.reshape(nb, L, cp).astype(matmul_dtype)
    if pad > 0:
        zrim = jnp.zeros((nb, pad, cp), matmul_dtype)
        h1p = jnp.concatenate([zrim, h1_3d, zrim], axis=1)                # (Nb, L+2p, Cp)
    else:
        h1p = h1_3d
    acc = None
    for k in range(K):
        start = k * dilation
        tap = h1p[:, start:start + L, :].reshape(M, cp)
        part = jnp.dot(tap, w2_ref[k * cp:(k + 1) * cp, :],
                       preferred_element_type=jnp.float32)
        acc = part if acc is None else acc + part
    h2 = jnp.maximum(acc + b2_ref[...], 0.0)                              # (M, Cp) f32

    # ---- conv3: 1x1 residual path straight from the already-cast, unshifted input ---
    res = jnp.dot(x.reshape(M, cin), w3_ref[...],
                  preferred_element_type=jnp.float32) + b3_ref[...]

    # ---- final activation: lane-dense, unmasked store -------------------------------
    o_ref[...] = jnp.maximum(h2 + res, 0.0).reshape(nb, L, cp).astype(o_ref.dtype)


def temporal_block(x_nlc, w1, b1, w2, b2, w3, b3, *, kernel_size, dilation, padding,
                   block_batch=None, matmul_dtype=jnp.bfloat16, out_dtype=jnp.float32,
                   channel_pad=128, vmem_limit_bytes=None):
    """x_nlc: (N, L, Cin) float32, un-padded (conv padding is handled in-kernel).

    Weights in kernel layout: w1 (K, Cin, Cout), w2 (K, Cout, Cout), w3 (Cin, Cout),
    biases (Cout,). matmul_dtype: MXU operand dtype (bf16 default, fine on v5e/v6e/v7x);
    accumulation and all elementwise math stay f32. out_dtype=bf16 halves writeback
    bytes on store-bound v5e. channel_pad: lane-density target (128; use 256 to fill
    v6e/v7x 2x256^2 MXU tiles at real channel counts).
    """
    N, L, Cin = x_nlc.shape
    K = kernel_size
    Cout = w1.shape[-1]
    if 2 * padding != dilation * (kernel_size - 1):
        raise ValueError("TemporalBlock residual add requires length-preserving convs: "
                         "2*padding == dilation*(kernel_size-1)")
    Nb = N if block_batch is None else block_batch
    if N % Nb != 0:
        raise ValueError("batch must be divisible by block_batch")

    Cp = ((Cout + channel_pad - 1) // channel_pad) * channel_pad

    def pad_last(a):
        if Cp == Cout:
            return a
        return jnp.pad(a, [(0, 0)] * (a.ndim - 1) + [(0, Cp - Cout)])

    # im2col weight layouts, zero-padded to lane-dense output width Cp.
    w1f = pad_last(jnp.reshape(w1, (K * Cin, Cout))).astype(matmul_dtype)       # (K*Cin, Cp)
    w2p = w2 if Cp == Cout else jnp.pad(w2, ((0, 0), (0, Cp - Cout), (0, Cp - Cout)))
    w2f = jnp.reshape(w2p, (K * Cp, Cp)).astype(matmul_dtype)                   # (K*Cp, Cp)
    w3f = pad_last(w3).astype(matmul_dtype)                                     # (Cin, Cp)
    b1p = pad_last(b1.reshape(1, Cout)).astype(jnp.float32)
    b2p = pad_last(b2.reshape(1, Cout)).astype(jnp.float32)
    b3p = pad_last(b3.reshape(1, Cout)).astype(jnp.float32)

    # Explicit VMEM budget: 2x double-buffered in/out blocks + resident weight slabs
    # + live activation temporaries. Capped v7x-safe at 64 MiB; pass a larger value
    # (toward 128 MiB) on v6e if you grow the block.
    mm_bytes = jnp.dtype(matmul_dtype).itemsize
    act_bytes = Nb * L * Cp * 4
    est = (2 * Nb * L * Cin * 4 + 2 * Nb * L * Cp * jnp.dtype(out_dtype).itemsize
           + (K * Cin + K * Cp + Cin) * Cp * mm_bytes + 3 * Cp * 4
           + (K + 4) * act_bytes)
    if vmem_limit_bytes is None:
        vmem_limit_bytes = min(64 << 20, max(32 << 20, 2 * int(est)))

    kern = functools.partial(temporal_block_kernel, K=K, dilation=dilation,
                             pad=padding, matmul_dtype=matmul_dtype)

    out_pad = pl.pallas_call(
        kern,
        out_shape=jax.ShapeDtypeStruct((N, L, Cp), out_dtype),
        grid_spec=pltpu.PrefetchScalarGridSpec(
            num_scalar_prefetch=0,
            grid=(N // Nb,),
            in_specs=[
                pl.BlockSpec((Nb, L, Cin), lambda b: (b, 0, 0)),
                # Constant index maps -> weight/bias blocks stay VMEM-resident.
                pl.BlockSpec((K * Cin, Cp), lambda b: (0, 0)),
                pl.BlockSpec((1, Cp), lambda b: (0, 0)),
                pl.BlockSpec((K * Cp, Cp), lambda b: (0, 0)),
                pl.BlockSpec((1, Cp), lambda b: (0, 0)),
                pl.BlockSpec((Cin, Cp), lambda b: (0, 0)),
                pl.BlockSpec((1, Cp), lambda b: (0, 0)),
            ],
            out_specs=pl.BlockSpec((Nb, L, Cp), lambda b: (b, 0, 0)),
        ),
        compiler_params=pltpu.CompilerParams(
            dimension_semantics=("parallel",),
            vmem_limit_bytes=int(vmem_limit_bytes)),
    )(x_nlc, w1f, b1p, w2f, b2p, w3f, b3p)

    # Padded lanes are exact zeros; a stacked TCN could consume the lane-dense slab
    # directly instead of slicing here.
    return out_pad[:, :, :Cout]


def weight_norm_effective(v, g):
    """PyTorch weight_norm (dim=0): w = g * v / ||v||, norm over (Cin, K) per
    output channel. v: (Cout, Cin, K), g: (Cout,)."""
    norm = jnp.sqrt(jnp.sum(v * v, axis=(1, 2), keepdims=True))
    return (g.reshape(-1, 1, 1) / norm) * v


def reference_forward(x_ncl, wv1, g1, b1, wv2, g2, b2, wv3, g3, b3,
                      *, dilation, padding):
    """Pure-JAX reference (NCL layout, like PyTorch)."""
    w1 = weight_norm_effective(wv1, g1)
    w2 = weight_norm_effective(wv2, g2)
    w3 = weight_norm_effective(wv3, g3)

    def conv1d(x, w, b, dil, pad):
        y = lax.conv_general_dilated(
            x, w, window_strides=(1,), padding=[(pad, pad)],
            rhs_dilation=(dil,), dimension_numbers=("NCH", "OIH", "NCH"))
        return y + b.reshape(1, -1, 1)

    h1 = jnp.maximum(conv1d(x_ncl, w1, b1, dilation, padding), 0.0)
    h2 = jnp.maximum(conv1d(h1, w2, b2, dilation, padding), 0.0)
    res = conv1d(x_ncl, w3, b3, 1, 0)
    return jnp.maximum(h2 + res, 0.0)


if __name__ == "__main__":
    # Module hyper-params (length-preserving: 2*padding == dilation*(kernel_size-1)).
    n_input, n_output = 4, 8
    kernel_size, dilation, padding = 3, 2, 2
    N, L = 16, 64
    Nb = 2          # grid = (8,): >=4 pipelined steps per TensorCore under megacore.

    key = jax.random.PRNGKey(0)
    ks = jax.random.split(key, 8)

    x_ncl = jax.random.normal(ks[0], (N, n_input, L), dtype=jnp.float32)

    # weight_norm params: v ~ N(0, 0.01) (init_weights), g = ||v|| at init,
    # biases ~ U(-1/sqrt(fan_in), 1/sqrt(fan_in)) (PyTorch Conv1d default).
    def make_conv(kv, kb, cout, cin, ksz):
        v = 0.01 * jax.random.normal(kv, (cout, cin, ksz), dtype=jnp.float32)
        g = jnp.sqrt(jnp.sum(v * v, axis=(1, 2)))
        bound = 1.0 / jnp.sqrt(cin * ksz)
        b = jax.random.uniform(kb, (cout,), minval=-bound, maxval=bound,
                               dtype=jnp.float32)
        return v, g, b

    wv1, g1, b1 = make_conv(ks[1], ks[2], n_output, n_input, kernel_size)
    wv2, g2, b2 = make_conv(ks[3], ks[4], n_output, n_output, kernel_size)
    wv3, g3, b3 = make_conv(ks[5], ks[6], n_output, n_input, 1)

    # Effective (weight-normed) weights in kernel layout (K, Cin, Cout).
    # TODO(synk): the weight_norm reparameterization (w = g*v/||v||) is computed
    # host/XLA-side per forward, matching PyTorch; it is not fused into the kernel.
    w1_eff = jnp.transpose(weight_norm_effective(wv1, g1), (2, 1, 0))
    w2_eff = jnp.transpose(weight_norm_effective(wv2, g2), (2, 1, 0))
    w3_eff = weight_norm_effective(wv3, g3)[:, :, 0].T        # (Cin, Cout)

    # Kernel consumes NLC (channels on the lane axis).
    x_nlc = jnp.transpose(x_ncl, (0, 2, 1))

    ref = reference_forward(x_ncl, wv1, g1, b1, wv2, g2, b2, wv3, g3, b3,
                            dilation=dilation, padding=padding)

    # ---- f32 MXU operands (exact-ish check) ----
    out_nlc = temporal_block(
        x_nlc, w1_eff, b1, w2_eff, b2, w3_eff, b3,
        kernel_size=kernel_size, dilation=dilation, padding=padding,
        block_batch=Nb, matmul_dtype=jnp.float32)
    out_nlc = jax.block_until_ready(out_nlc)
    out_ncl = jnp.transpose(out_nlc, (0, 2, 1))
    assert out_ncl.shape == (N, n_output, L)
    assert jnp.allclose(out_ncl, ref, atol=1e-5, rtol=1e-5), (
        f"f32 max err {jnp.max(jnp.abs(out_ncl - ref))}")

    # ---- bf16 MXU operands (default; MXU is bf16-native on v5e/v6e/v7x), f32 accum ----
    out_bf16 = temporal_block(
        x_nlc, w1_eff, b1, w2_eff, b2, w3_eff, b3,
        kernel_size=kernel_size, dilation=dilation, padding=padding,
        block_batch=Nb, matmul_dtype=jnp.bfloat16)
    out_bf16 = jax.block_until_ready(out_bf16)
    out_bf16_ncl = jnp.transpose(out_bf16, (0, 2, 1))
    assert jnp.allclose(out_bf16_ncl, ref, atol=3e-2, rtol=3e-2), (
        f"bf16 max err {jnp.max(jnp.abs(out_bf16_ncl - ref))}")

    print("KERNEL_OK")
</pallas_src>

<mosaic_0001>
module attributes {stable_mosaic.version = 11 : i64} {
  func.func @temporal_block_kernel(%arg0: i32, %arg1: memref<2x64x4xf32, #tpu.memory_space<vmem>>, %arg2: memref<12x128xf32, #tpu.memory_space<vmem>>, %arg3: memref<1x128xf32, #tpu.memory_space<vmem>>, %arg4: memref<384x128xf32, #tpu.memory_space<vmem>>, %arg5: memref<1x128xf32, #tpu.memory_space<vmem>>, %arg6: memref<4x128xf32, #tpu.memory_space<vmem>>, %arg7: memref<1x128xf32, #tpu.memory_space<vmem>>, %arg8: memref<2x64x128xf32, #tpu.memory_space<vmem>>) attributes {dimension_semantics = [#tpu.dimension_semantics<parallel>], iteration_bounds = array<i64: 8>, scalar_prefetch = 0 : i64, scratch_operands = 0 : i64, tpu.core_type = #tpu.core_type<tc>, window_params = [{transform_indices = @transform_0, window_bounds = array<i64: 2, 64, 4>}, {pipeline_mode = #tpu.pipeline_mode<synchronous>, transform_indices = @transform_1, window_bounds = array<i64: 12, 128>}, {pipeline_mode = #tpu.pipeline_mode<synchronous>, transform_indices = @transform_2, window_bounds = array<i64: 1, 128>}, {pipeline_mode = #tpu.pipeline_mode<synchronous>, transform_indices = @transform_3, window_bounds = array<i64: 384, 128>}, {pipeline_mode = #tpu.pipeline_mode<synchronous>, transform_indices = @transform_4, window_bounds = array<i64: 1, 128>}, {pipeline_mode = #tpu.pipeline_mode<synchronous>, transform_indices = @transform_5, window_bounds = array<i64: 4, 128>}, {pipeline_mode = #tpu.pipeline_mode<synchronous>, transform_indices = @transform_6, window_bounds = array<i64: 1, 128>}, {transform_indices = @transform_7, window_bounds = array<i64: 2, 64, 128>}]} {
    %c0 = arith.constant 0 : index
    %c0_0 = arith.constant 0 : index
    %c0_1 = arith.constant 0 : index
    %0 = vector.load %arg1[%c0, %c0_0, %c0_1] : memref<2x64x4xf32, #tpu.memory_space<vmem>>, vector<2x64x4xf32>
    %cst = arith.constant 0.000000e+00 : f32
    %1 = vector.broadcast %cst : f32 to vector<2x2x4xf32>
    %2 = vector.extract_strided_slice %0 {offsets = [0, 0, 0], sizes = [2, 62, 4], strides = [1, 1, 1]} : vector<2x64x4xf32> to vector<2x62x4xf32>
    %3 = tpu.concatenate %1, %2 in 1 : vector<2x2x4xf32>, vector<2x62x4xf32> -> vector<2x64x4xf32>
    %cst_2 = arith.constant 0.000000e+00 : f32
    %4 = vector.broadcast %cst_2 : f32 to vector<2x2x4xf32>
    %5 = vector.extract_strided_slice %0 {offsets = [0, 2, 0], sizes = [2, 62, 4], strides = [1, 1, 1]} : vector<2x64x4xf32> to vector<2x62x4xf32>
    %6 = tpu.concatenate %5, %4 in 1 : vector<2x62x4xf32>, vector<2x2x4xf32> -> vector<2x64x4xf32>
    %7 = tpu.concatenate %3, %0, %6 in 2 : vector<2x64x4xf32>, vector<2x64x4xf32>, vector<2x64x4xf32> -> vector<2x64x12xf32>
    %8 = vector.shape_cast %7 : vector<2x64x12xf32> to vector<128x12xf32>
    %c0_3 = arith.constant 0 : index
    %c0_4 = arith.constant 0 : index
    %9 = vector.load %arg2[%c0_3, %c0_4] : memref<12x128xf32, #tpu.memory_space<vmem>>, vector<12x128xf32>
    %cst_5 = arith.constant dense<0.000000e+00> : vector<128x128xf32>
    %10 = tpu.matmul %8, %9, %cst_5 {dimension_numbers = #tpu.dot_dimension_numbers<[1], [0], [0], [1], [0, 0, 1, 1], [], []>} : vector<128x12xf32>, vector<12x128xf32>, vector<128x128xf32> -> vector<128x128xf32>
    %c0_6 = arith.constant 0 : index
    %c0_7 = arith.constant 0 : index
    %11 = vector.load %arg3[%c0_6, %c0_7] : memref<1x128xf32, #tpu.memory_space<vmem>>, vector<1x128xf32>
    %12 = vector.broadcast %11 : vector<1x128xf32> to vector<128x128xf32>
    %13 = arith.addf %10, %12 : vector<128x128xf32>
    %cst_8 = arith.constant 0.000000e+00 : f32
    %14 = vector.broadcast %cst_8 : f32 to vector<128x128xf32>
    %15 = arith.maximumf %13, %14 : vector<128x128xf32>
    %16 = vector.shape_cast %15 : vector<128x128xf32> to vector<2x64x128xf32>
    %cst_9 = arith.constant 0.000000e+00 : f32
    %17 = vector.broadcast %cst_9 : f32 to vector<2x2x128xf32>
    %18 = tpu.concatenate %17, %16, %17 in 1 : vector<2x2x128xf32>, vector<2x64x128xf32>, vector<2x2x128xf32> -> vector<2x68x128xf32>
    %19 = vector.extract_strided_slice %18 {offsets = [0, 0, 0], sizes = [2, 64, 128], strides = [1, 1, 1]} : vector<2x68x128xf32> to vector<2x64x128xf32>
    %20 = vector.shape_cast %19 : vector<2x64x128xf32> to vector<128x128xf32>
    %c0_10 = arith.constant 0 : index
    %c0_11 = arith.constant 0 : index
    %21 = vector.load %arg4[%c0_10, %c0_11] : memref<384x128xf32, #tpu.memory_space<vmem>>, vector<128x128xf32>
    %cst_12 = arith.constant dense<0.000000e+00> : vector<128x128xf32>
    %22 = tpu.matmul %20, %21, %cst_12 {dimension_numbers = #tpu.dot_dimension_numbers<[1], [0], [0], [1], [0, 0, 1, 1], [], []>} : vector<128x128xf32>, vector<128x128xf32>, vector<128x128xf32> -> vector<128x128xf32>
    %23 = vector.extract_strided_slice %18 {offsets = [0, 2, 0], sizes = [2, 64, 128], strides = [1, 1, 1]} : vector<2x68x128xf32> to vector<2x64x128xf32>
    %24 = vector.shape_cast %23 : vector<2x64x128xf32> to vector<128x128xf32>
    %c128 = arith.constant 128 : index
    %c0_13 = arith.constant 0 : index
    %25 = vector.load %arg4[%c128, %c0_13] : memref<384x128xf32, #tpu.memory_space<vmem>>, vector<128x128xf32>
    %cst_14 = arith.constant dense<0.000000e+00> : vector<128x128xf32>
    %26 = tpu.matmul %24, %25, %cst_14 {dimension_numbers = #tpu.dot_dimension_numbers<[1], [0], [0], [1], [0, 0, 1, 1], [], []>} : vector<128x128xf32>, vector<128x128xf32>, vector<128x128xf32> -> vector<128x128xf32>
    %27 = arith.addf %22, %26 : vector<128x128xf32>
    %28 = vector.extract_strided_slice %18 {offsets = [0, 4, 0], sizes = [2, 64, 128], strides = [1, 1, 1]} : vector<2x68x128xf32> to vector<2x64x128xf32>
    %29 = vector.shape_cast %28 : vector<2x64x128xf32> to vector<128x128xf32>
    %c256 = arith.constant 256 : index
    %c0_15 = arith.constant 0 : index
    %30 = vector.load %arg4[%c256, %c0_15] : memref<384x128xf32, #tpu.memory_space<vmem>>, vector<128x128xf32>
    %cst_16 = arith.constant dense<0.000000e+00> : vector<128x128xf32>
    %31 = tpu.matmul %29, %30, %cst_16 {dimension_numbers = #tpu.dot_dimension_numbers<[1], [0], [0], [1], [0, 0, 1, 1], [], []>} : vector<128x128xf32>, vector<128x128xf32>, vector<128x128xf32> -> vector<128x128xf32>
    %32 = arith.addf %27, %31 : vector<128x128xf32>
    %c0_17 = arith.constant 0 : index
    %c0_18 = arith.constant 0 : index
    %33 = vector.load %arg5[%c0_17, %c0_18] : memref<1x128xf32, #tpu.memory_space<vmem>>, vector<1x128xf32>
    %34 = vector.broadcast %33 : vector<1x128xf32> to vector<128x128xf32>
    %35 = arith.addf %32, %34 : vector<128x128xf32>
    %cst_19 = arith.constant 0.000000e+00 : f32
    %36 = vector.broadcast %cst_19 : f32 to vector<128x128xf32>
    %37 = arith.maximumf %35, %36 : vector<128x128xf32>
    %38 = vector.shape_cast %0 : vector<2x64x4xf32> to vector<128x4xf32>
    %c0_20 = arith.constant 0 : index
    %c0_21 = arith.constant 0 : index
    %39 = vector.load %arg6[%c0_20, %c0_21] : memref<4x128xf32, #tpu.memory_space<vmem>>, vector<4x128xf32>
    %cst_22 = arith.constant dense<0.000000e+00> : vector<128x128xf32>
    %40 = tpu.matmul %38, %39, %cst_22 {dimension_numbers = #tpu.dot_dimension_numbers<[1], [0], [0], [1], [0, 0, 1, 1], [], []>} : vector<128x4xf32>, vector<4x128xf32>, vector<128x128xf32> -> vector<128x128xf32>
    %c0_23 = arith.constant 0 : index
    %c0_24 = arith.constant 0 : index
    %41 = vector.load %arg7[%c0_23, %c0_24] : memref<1x128xf32, #tpu.memory_space<vmem>>, vector<1x128xf32>
    %42 = vector.broadcast %41 : vector<1x128xf32> to vector<128x128xf32>
    %43 = arith.addf %40, %42 : vector<128x128xf32>
    %44 = arith.addf %37, %43 : vector<128x128xf32>
    %cst_25 = arith.constant 0.000000e+00 : f32
    %45 = vector.broadcast %cst_25 : f32 to vector<128x128xf32>
    %46 = arith.maximumf %44, %45 : vector<128x128xf32>
    %47 = vector.shape_cast %46 : vector<128x128xf32> to vector<2x64x128xf32>
    %c0_26 = arith.constant 0 : index
    %c0_27 = arith.constant 0 : index
    %c0_28 = arith.constant 0 : index
    %48 = vector.load %arg8[%c0_26, %c0_27, %c0_28] : memref<2x64x128xf32, #tpu.memory_space<vmem>>, vector<2x64x128xf32>
    tpu.vector_store %arg8[%c0_26, %c0_27, %c0_28], %47 {strides = array<i32>} : memref<2x64x128xf32, #tpu.memory_space<vmem>>, vector<2x64x128xf32>,
    return
  }
  func.func @transform_0(%arg0: i32) -> (i32, i32, i32) {
    %c0_i32 = arith.constant 0 : i32
    %c0_i32_0 = arith.constant 0 : i32
    %c0_i32_1 = arith.constant 0 : i32
    return %arg0, %c0_i32, %c0_i32_0 : i32, i32, i32
  }
  func.func @transform_1(%arg0: i32) -> (i32, i32) {
    %c0_i32 = arith.constant 0 : i32
    %c0_i32_0 = arith.constant 0 : i32
    %c0_i32_1 = arith.constant 0 : i32
    return %c0_i32, %c0_i32_0 : i32, i32
  }
  func.func @transform_2(%arg0: i32) -> (i32, i32) {
    %c0_i32 = arith.constant 0 : i32
    %c0_i32_0 = arith.constant 0 : i32
    %c0_i32_1 = arith.constant 0 : i32
    return %c0_i32, %c0_i32_0 : i32, i32
  }
  func.func @transform_3(%arg0: i32) -> (i32, i32) {
    %c0_i32 = arith.constant 0 : i32
    %c0_i32_0 = arith.constant 0 : i32
    %c0_i32_1 = arith.constant 0 : i32
    return %c0_i32, %c0_i32_0 : i32, i32
  }
  func.func @transform_4(%arg0: i32) -> (i32, i32) {
    %c0_i32 = arith.constant 0 : i32
    %c0_i32_0 = arith.constant 0 : i32
    %c0_i32_1 = arith.constant 0 : i32
    return %c0_i32, %c0_i32_0 : i32, i32
  }
  func.func @transform_5(%arg0: i32) -> (i32, i32) {
    %c0_i32 = arith.constant 0 : i32
    %c0_i32_0 = arith.constant 0 : i32
    %c0_i32_1 = arith.constant 0 : i32
    return %c0_i32, %c0_i32_0 : i32, i32
  }
  func.func @transform_6(%arg0: i32) -> (i32, i32) {
    %c0_i32 = arith.constant 0 : i32
    %c0_i32_0 = arith.constant 0 : i32
    %c0_i32_1 = arith.constant 0 : i32
    return %c0_i32, %c0_i32_0 : i32, i32
  }
  func.func @transform_7(%arg0: i32) -> (i32, i32, i32) {
    %c0_i32 = arith.constant 0 : i32
    %c0_i32_0 = arith.constant 0 : i32
    %c0_i32_1 = arith.constant 0 : i32
    return %arg0, %c0_i32, %c0_i32_0 : i32, i32, i32
  }
}

</mosaic_0001>

<llo_original>
// kernel: tpu_custom_call.1
$region0: #{tpu_custom_call.1}
  #allocation0 [shape = 'u32[]', space=smem, size = 0x4, offset = 0x4, fixed_abs, tag = 'smem constant byte address 0x4 - core index']
  #allocation1 [shape = 'u32[72,128]{1,0:T(1,128)}', space=vmem, size = 0x9000, scoped, tag = 'internal scratch']
  %s0 = inlined_call_operand.vmem [shape: f32[16,64,4], index: 0, kind: input, shape index: {}]
  %s1 = inlined_call_operand.vmem [shape: f32[12,128], index: 1, kind: input, shape index: {}]
  %s2 = inlined_call_operand.vmem [shape: f32[1,128], index: 2, kind: input, shape index: {}]
  %s3 = inlined_call_operand.vmem [shape: f32[384,128], index: 3, kind: input, shape index: {}]
  %s4 = inlined_call_operand.vmem [shape: f32[1,128], index: 4, kind: input, shape index: {}]
  %s5 = inlined_call_operand.vmem [shape: f32[4,128], index: 5, kind: input, shape index: {}]
  %s6 = inlined_call_operand.vmem [shape: f32[1,128], index: 6, kind: input, shape index: {}]
  %s7 = inlined_call_operand.hbm [shape: f32[16,64,128], index: 7, kind: output, shape index: {}]
  %s8 = sld [smem:[#allocation0]]
  $region61: #{tpu_custom_call.1} parent=0
    _
  %s10 = ssub.s32 1, %s8
  %s11 = scalar_select 0, %s10, %s8
  $region1: #{tpu_custom_call.1} parent=0
    #allocation2 [shape = 'u8[131072]{0}', space=vmem, size = 0x20000, scoped, tag = 'output window, operand 0']
    #allocation3 [shape = 's32[2]{0}', space=sflag, size = 0x8, scoped, tag = 'scoped memory for tpu_custom_call.1']
    %12 = vsyncpa [#allocation3], 0
    %s13 = scalar_lea.sflag [#allocation3], 1
    %14 = vsyncpa %s13, 0
    loop: start=0, step=1, limit=10
    $region2: #{tpu_custom_call.1} parent=1 // loop_pre_header
      _
    $region3: #{tpu_custom_call.1} parent=1 // loop_header
      %s16 = sphi 0, %s20
      %p17 = scmp.ge.s32.totalorder %s16, 10
      %s26 = sphi 0, %s28
      %s29 = sphi 0, %s26
      %s30 = sphi 0, %s29
      %s46 = sphi 0, %s30
      %s50 = sphi 0, %s50
      %s52 = sphi 0, %s50
      %s53 = sphi 0, %s52
      %s67 = sphi 0, %s53
      %s71 = sphi 0, %s71
      %s73 = sphi 0, %s71
      %s74 = sphi 0, %s73
      %s88 = sphi 0, %s74
      %s92 = sphi 0, %s92
      %s94 = sphi 0, %s92
      %s95 = sphi 0, %s94
      %s109 = sphi 0, %s95
      %s113 = sphi 0, %s113
      %s115 = sphi 0, %s113
      %s116 = sphi 0, %s115
      %s130 = sphi 0, %s116
      %s134 = sphi 0, %s134
      %s136 = sphi 0, %s134
      %s137 = sphi 0, %s136
      %s151 = sphi 0, %s137
      %s155 = sphi 0, %s155
      %s157 = sphi 0, %s155
      %s158 = sphi 0, %s157
      %s172 = sphi 0, %s158
      %s178 = sphi 0, %s180
      %s181 = sphi 0, %s178
      %s182 = sphi 0, %s181
      %s198 = sphi 0, %s182
    $region4: #{tpu_custom_call.1} parent=1 // loop_header_branch
      %19 = sbr.rel (%p17) target = $region8
    $region5: #{tpu_custom_call.1} parent=1 // loop_body
      %s21 = ssub.s32 %s16, 1
      %s22 = ssub.s32 %s16, 2
      %s23 = sadd.s32 %s16, 1
      %s24 = ssub.s32 %s16, %s23
      %p25 = scmp.eq.s32.totalorder %s24, 0
      %s27 = sadd.s32 %s26, 1
      %s28 = scalar_select %p25, %s26, %s27
      %p31 = pneg %p25
      %p32 = scmp.eq.s32.totalorder %s16, 7
      %p33 = por %p31, %p32
      %p34 = scmp.ne.s32.totalorder %s26, %s29
      %p35 = scmp.eq.s32.totalorder %s16, 0
      %p36 = por %p34, %p35
      %p37 = scmp.ne.s32.totalorder %s26, %s29
      %p38 = scmp.eq.s32.totalorder %s21, 7
      %p39 = por %p37, %p38
      %p40 = scmp.ne.s32.totalorder %s29, %s30
      %p41 = scmp.eq.s32.totalorder %s21, 0
      %p42 = por %p40, %p41
      %p43 = scmp.ne.s32.totalorder %s29, %s30
      %p44 = scmp.eq.s32.totalorder %s22, 7
      %p45 = por %p43, %p44
      %p47 = scmp.ne.s32.totalorder %s30, %s46
      %p48 = scmp.eq.s32.totalorder %s22, 0
      %p49 = por %p47, %p48
      %s51 = sadd.s32 %s50, 1
      %p54 = scmp.eq.s32.totalorder %s16, 7
      %p55 = scmp.ne.s32.totalorder %s50, %s52
      %p56 = scmp.eq.s32.totalorder %s16, 0
      %p57 = por %p55, %p56
      %p58 = scmp.ne.s32.totalorder %s50, %s52
      %p59 = scmp.eq.s32.totalorder %s21, 7
      %p60 = por %p58, %p59
      %p61 = scmp.ne.s32.totalorder %s52, %s53
      %p62 = scmp.eq.s32.totalorder %s21, 0
      %p63 = por %p61, %p62
      %p64 = scmp.ne.s32.totalorder %s52, %s53
      %p65 = scmp.eq.s32.totalorder %s22, 7
      %p66 = por %p64, %p65
      %p68 = scmp.ne.s32.totalorder %s53, %s67
      %p69 = scmp.eq.s32.totalorder %s22, 0
      %p70 = por %p68, %p69
      %s72 = sadd.s32 %s71, 1
      %p75 = scmp.eq.s32.totalorder %s16, 7
      %p76 = scmp.ne.s32.totalorder %s71, %s73
      %p77 = scmp.eq.s32.totalorder %s16, 0
      %p78 = por %p76, %p77
      %p79 = scmp.ne.s32.totalorder %s71, %s73
      %p80 = scmp.eq.s32.totalorder %s21, 7
      %p81 = por %p79, %p80
      %p82 = scmp.ne.s32.totalorder %s73, %s74
      %p83 = scmp.eq.s32.totalorder %s21, 0
      %p84 = por %p82, %p83
      %p85 = scmp.ne.s32.totalorder %s73, %s74
      %p86 = scmp.eq.s32.totalorder %s22, 7
      %p87 = por %p85, %p86
      %p89 = scmp.ne.s32.totalorder %s74, %s88
      %p90 = scmp.eq.s32.totalorder %s22, 0
      %p91 = por %p89, %p90
      %s93 = sadd.s32 %s92, 1
      %p96 = scmp.eq.s32.totalorder %s16, 7
      %p97 = scmp.ne.s32.totalorder %s92, %s94
      %p98 = scmp.eq.s32.totalorder %s16, 0
      %p99 = por %p97, %p98
      %p100 = scmp.ne.s32.totalorder %s92, %s94
      %p101 = scmp.eq.s32.totalorder %s21, 7
      %p102 = por %p100, %p101
      %p103 = scmp.ne.s32.totalorder %s94, %s95
      %p104 = scmp.eq.s32.totalorder %s21, 0
      %p105 = por %p103, %p104
      %p106 = scmp.ne.s32.totalorder %s94, %s95
      %p107 = scmp.eq.s32.totalorder %s22, 7
      %p108 = por %p106, %p107
      %p110 = scmp.ne.s32.totalorder %s95, %s109
      %p111 = scmp.eq.s32.totalorder %s22, 0
      %p112 = por %p110, %p111
      %s114 = sadd.s32 %s113, 1
      %p117 = scmp.eq.s32.totalorder %s16, 7
      %p118 = scmp.ne.s32.totalorder %s113, %s115
      %p119 = scmp.eq.s32.totalorder %s16, 0
      %p120 = por %p118, %p119
      %p121 = scmp.ne.s32.totalorder %s113, %s115
      %p122 = scmp.eq.s32.totalorder %s21, 7
      %p123 = por %p121, %p122
      %p124 = scmp.ne.s32.totalorder %s115, %s116
      %p125 = scmp.eq.s32.totalorder %s21, 0
      %p126 = por %p124, %p125
      %p127 = scmp.ne.s32.totalorder %s115, %s116
      %p128 = scmp.eq.s32.totalorder %s22, 7
      %p129 = por %p127, %p128
      %p131 = scmp.ne.s32.totalorder %s116, %s130
      %p132 = scmp.eq.s32.totalorder %s22, 0
      %p133 = por %p131, %p132
      %s135 = sadd.s32 %s134, 1
      %p138 = scmp.eq.s32.totalorder %s16, 7
      %p139 = scmp.ne.s32.totalorder %s134, %s136
      %p140 = scmp.eq.s32.totalorder %s16, 0
      %p141 = por %p139, %p140
      %p142 = scmp.ne.s32.totalorder %s134, %s136
      %p143 = scmp.eq.s32.totalorder %s21, 7
      %p144 = por %p142, %p143
      %p145 = scmp.ne.s32.totalorder %s136, %s137
      %p146 = scmp.eq.s32.totalorder %s21, 0
      %p147 = por %p145, %p146
      %p148 = scmp.ne.s32.totalorder %s136, %s137
      %p149 = scmp.eq.s32.totalorder %s22, 7
      %p150 = por %p148, %p149
      %p152 = scmp.ne.s32.totalorder %s137, %s151
      %p153 = scmp.eq.s32.totalorder %s22, 0
      %p154 = por %p152, %p153
      %s156 = sadd.s32 %s155, 1
      %p159 = scmp.eq.s32.totalorder %s16, 7
      %p160 = scmp.ne.s32.totalorder %s155, %s157
      %p161 = scmp.eq.s32.totalorder %s16, 0
      %p162 = por %p160, %p161
      %p163 = scmp.ne.s32.totalorder %s155, %s157
      %p164 = scmp.eq.s32.totalorder %s21, 7
      %p165 = por %p163, %p164
      %p166 = scmp.ne.s32.totalorder %s157, %s158
      %p167 = scmp.eq.s32.totalorder %s21, 0
      %p168 = por %p166, %p167
      %p169 = scmp.ne.s32.totalorder %s157, %s158
      %p170 = scmp.eq.s32.totalorder %s22, 7
      %p171 = por %p169, %p170
      %p173 = scmp.ne.s32.totalorder %s158, %s172
      %p174 = scmp.eq.s32.totalorder %s22, 0
      %p175 = por %p173, %p174
      %s176 = ssub.s32 %s16, %s23
      %p177 = scmp.eq.s32.totalorder %s176, 0
      %s179 = sadd.s32 %s178, 1
      %s180 = scalar_select %p177, %s178, %s179
      %p183 = pneg %p177
      %p184 = scmp.eq.s32.totalorder %s16, 7
      %p185 = por %p183, %p184
      %p186 = scmp.ne.s32.totalorder %s178, %s181
      %p187 = scmp.eq.s32.totalorder %s16, 0
      %p188 = por %p186, %p187
      %p189 = scmp.ne.s32.totalorder %s178, %s181
      %p190 = scmp.eq.s32.totalorder %s21, 7
      %p191 = por %p189, %p190
      %p192 = scmp.ne.s32.totalorder %s181, %s182
      %p193 = scmp.eq.s32.totalorder %s21, 0
      %p194 = por %p192, %p193
      %p195 = scmp.ne.s32.totalorder %s181, %s182
      %p196 = scmp.eq.s32.totalorder %s22, 7
      %p197 = por %p195, %p196
      %p199 = scmp.ne.s32.totalorder %s182, %s198
      %p200 = scmp.eq.s32.totalorder %s22, 0
      %p201 = por %p199, %p200
      %p202 = scmp.le.s32.totalorder 1, %s16
      %p203 = scmp.lt.s32.totalorder %s16, 9
      %p204 = pnand %p202, %p203
      %p205 = pneg %p204
      // Predicated region
      $region9: #{tpu_custom_call.1} parent=5 // pred_check
        _
      $region10: #{tpu_custom_call.1} parent=5 // pred_check_branch
        %207 = sbr.rel (%p204) target = $region12
      $region11: #{tpu_custom_call.1} parent=5 // pred_region
        %s208 = ssub.s32 %s16, 1
        // Predicated region
        $region13: #{tpu_custom_call.1} parent=11 // pred_check
          %p209 = pneg %p63
        $region14: #{tpu_custom_call.1} parent=11 // pred_check_branch
          %211 = sbr.rel (%p209) target = $region16
        $region15: #{tpu_custom_call.1} parent=11 // pred_region
          _
        $region16: #{tpu_custom_call.1} parent=11 // pred_fallthru
          _
        // Predicated region
        $region17: #{tpu_custom_call.1} parent=11 // pred_check
          %p212 = pneg %p84
        $region18: #{tpu_custom_call.1} parent=11 // pred_check_branch
          %214 = sbr.rel (%p212) target = $region20
        $region19: #{tpu_custom_call.1} parent=11 // pred_region
          _
        $region20: #{tpu_custom_call.1} parent=11 // pred_fallthru
          _
        // Predicated region
        $region21: #{tpu_custom_call.1} parent=11 // pred_check
          %p215 = pneg %p105
        $region22: #{tpu_custom_call.1} parent=11 // pred_check_branch
          %217 = sbr.rel (%p215) target = $region24
        $region23: #{tpu_custom_call.1} parent=11 // pred_region
          _
        $region24: #{tpu_custom_call.1} parent=11 // pred_fallthru
          _
        // Predicated region
        $region25: #{tpu_custom_call.1} parent=11 // pred_check
          %p218 = pneg %p126
        $region26: #{tpu_custom_call.1} parent=11 // pred_check_branch
          %220 = sbr.rel (%p218) target = $region28
        $region27: #{tpu_custom_call.1} parent=11 // pred_region
          _
        $region28: #{tpu_custom_call.1} parent=11 // pred_fallthru
          _
        // Predicated region
        $region29: #{tpu_custom_call.1} parent=11 // pred_check
          %p221 = pneg %p147
        $region30: #{tpu_custom_call.1} parent=11 // pred_check_branch
          %223 = sbr.rel (%p221) target = $region32
        $region31: #{tpu_custom_call.1} parent=11 // pred_region
          _
        $region32: #{tpu_custom_call.1} parent=11 // pred_fallthru
          _
        // Predicated region
        $region33: #{tpu_custom_call.1} parent=11 // pred_check
          %p224 = pneg %p168
        $region34: #{tpu_custom_call.1} parent=11 // pred_check_branch
          %226 = sbr.rel (%p224) target = $region36
        $region35: #{tpu_custom_call.1} parent=11 // pred_region
          _
        $region36: #{tpu_custom_call.1} parent=11 // pred_fallthru
          _
      $region12: #{tpu_custom_call.1} parent=5 // pred_fallthru
        _
      %p227 = scmp.lt.s32.totalorder %s16, 8
      // Predicated region
      $region37: #{tpu_custom_call.1} parent=5 // pred_check
        %p228 = pneg %p227
      $region38: #{tpu_custom_call.1} parent=5 // pred_check_branch
        %230 = sbr.rel (%p228) target = $region40
      $region39: #{tpu_custom_call.1} parent=5 // pred_region
        // Predicated region
        $region41: #{tpu_custom_call.1} parent=39 // pred_check
          %p231 = pneg %p36
        $region42: #{tpu_custom_call.1} parent=39 // pred_check_branch
          %233 = sbr.rel (%p231) target = $region44
        $region43: #{tpu_custom_call.1} parent=39 // pred_region
          %s234 = smul.u32 2, %s16
          %p235 = scmp.lt.s32.totalorder %s234, 15
          %s236 = scalar_select %p235, %s234, 15
          %s237 = smul.addr %s236, 8
          %s238 = smul.addr %s237, 8
          %s239 = scalar_lea.vmem %s0, %s238
          %s240 = smul.u32 2, %s16
        $region44: #{tpu_custom_call.1} parent=39 // pred_fallthru
          _
      $region40: #{tpu_custom_call.1} parent=5 // pred_fallthru
        _
      %p241 = scmp.le.s32.totalorder 1, %s16
      %p242 = scmp.lt.s32.totalorder %s16, 9
      %p243 = pnand %p241, %p242
      %p244 = pneg %p243
      // Predicated region
      $region45: #{tpu_custom_call.1} parent=5 // pred_check
        _
      $region46: #{tpu_custom_call.1} parent=5 // pred_check_branch
        %246 = sbr.rel (%p243) target = $region48
      $region47: #{tpu_custom_call.1} parent=5 // pred_region
        %s247 = ssub.s32 %s16, 1
        %s248 = smul.u32 2, %s21
        %p249 = scmp.lt.s32.totalorder %s248, 15
        %s250 = scalar_select %p249, %s248, 15
        %s251 = smul.addr %s250, 8
        %s252 = smul.addr %s251, 8
        %s253 = scalar_lea.vmem %s0, %s252
        %p254 = pneg %p42
        %p255 = pneg %p39
        %p256 = pneg %p63
        %p257 = pneg %p60
        %p258 = pneg %p84
        %p259 = pneg %p81
        %p260 = pneg %p105
        %p261 = pneg %p102
        %p262 = pneg %p126
        %p263 = pneg %p123
        %p264 = pneg %p147
        %p265 = pneg %p144
        %p266 = pneg %p168
        %p267 = pneg %p165
        %p268 = pneg %p194
        %p269 = pneg %p191
        %s270 = sand.u32 %s181, 1
        %s271 = scalar_lea.sflag [#allocation3], %s270
        %s272 = sand.u32 %s181, 1
        %s273 = smul.addr %s272, 128
        %s274 = scalar_lea.vmem [#allocation2], %s273
        %s275 = smul.u32 2, %s21
        %p276 = scmp.lt.s32.totalorder %s275, 15
        %s277 = scalar_select %p276, %s275, 15
        %s278 = smul.addr %s277, 8
        %s279 = smul.addr %s278, 8
        %s280 = scalar_lea.vmem %s0, %s279
        %s281 = smul.u32 2, %s21
        %s282 = smul.u32 2, %s21
        %v283 = vld [vmem:[%s280] sm:$0xff]
        %v284 = vld [vmem:[%s280 + $0x8] sm:$0xff]
        %v285 = vld [vmem:[%s280 + $0x10] sm:$0xff]
        %v286 = vld [vmem:[%s280 + $0x18] sm:$0xff]
        %v287 = vld [vmem:[%s280 + $0x20] sm:$0xff]
        %v288 = vld [vmem:[%s280 + $0x28] sm:$0xff]
        %v289 = vld [vmem:[%s280 + $0x30] sm:$0xff]
        %v290 = vld [vmem:[%s280 + $0x38] sm:$0xff]
        %v291 = vld [vmem:[%s280 + $0x40] sm:$0xff]
        %v292 = vld [vmem:[%s280 + $0x48] sm:$0xff]
        %v293 = vld [vmem:[%s280 + $0x50] sm:$0xff]
        %v294 = vld [vmem:[%s280 + $0x58] sm:$0xff]
        %v295 = vld [vmem:[%s280 + $0x60] sm:$0xff]
        %v296 = vld [vmem:[%s280 + $0x68] sm:$0xff]
        %v297 = vld [vmem:[%s280 + $0x70] sm:$0xff]
        %v298 = vld [vmem:[%s280 + $0x78] sm:$0xff]
        %vm315 = vcmask 1041408
        %v316 = vrot.slane %v283, 6
        %v317 = vrot.slane %v284, 6
        %v318 = vsel %vm315, %v316, %v317
        %v319 = vrot.slane %v285, 6
        %v320 = vsel %vm315, %v317, %v319
        %v321 = vrot.slane %v286, 6
        %v322 = vsel %vm315, %v319, %v321
        %v323 = vrot.slane %v287, 6
        %v324 = vsel %vm315, %v321, %v323
        %v325 = vrot.slane %v288, 6
        %v326 = vsel %vm315, %v323, %v325
        %v327 = vrot.slane %v289, 6
        %v328 = vsel %vm315, %v325, %v327
        %v329 = vrot.slane %v290, 6
        %v330 = vsel %vm315, %v327, %v329
        %v331 = vrot.slane %v291, 6
        %v332 = vrot.slane %v292, 6
        %v333 = vsel %vm315, %v331, %v332
        %v334 = vrot.slane %v293, 6
        %v335 = vsel %vm315, %v332, %v334
        %v336 = vrot.slane %v294, 6
        %v337 = vsel %vm315, %v334, %v336
        %v338 = vrot.slane %v295, 6
        %v339 = vsel %vm315, %v336, %v338
        %v340 = vrot.slane %v296, 6
        %v341 = vsel %vm315, %v338, %v340
        %v342 = vrot.slane %v297, 6
        %v343 = vsel %vm315, %v340, %v342
        %v344 = vrot.slane %v298, 6
        %v345 = vsel %vm315, %v342, %v344
        %v362 = vsel %vm315, 0.0, %v316
        %v363 = vsel %vm315, 0.0, %v331
        %vm364 = vcmask 1045504
        %v365 = vrot.slane %v283, 2
        %v366 = vrot.slane %v284, 2
        %v367 = vsel %vm364, %v365, %v366
        %v368 = vrot.slane %v285, 2
        %v369 = vsel %vm364, %v366, %v368
        %v370 = vrot.slane %v286, 2
        %v371 = vsel %vm364, %v368, %v370
        %v372 = vrot.slane %v287, 2
        %v373 = vsel %vm364, %v370, %v372
        %v374 = vrot.slane %v288, 2
        %v375 = vsel %vm364, %v372, %v374
        %v376 = vrot.slane %v289, 2
        %v377 = vsel %vm364, %v374, %v376
        %v378 = vrot.slane %v290, 2
        %v379 = vsel %vm364, %v376, %v378
        %v380 = vrot.slane %v291, 2
        %v381 = vrot.slane %v292, 2
        %v382 = vsel %vm364, %v380, %v381
        %v383 = vrot.slane %v293, 2
        %v384 = vsel %vm364, %v381, %v383
        %v385 = vrot.slane %v294, 2
        %v386 = vsel %vm364, %v383, %v385
        %v387 = vrot.slane %v295, 2
        %v388 = vsel %vm364, %v385, %v387
        %v389 = vrot.slane %v296, 2
        %v390 = vsel %vm364, %v387, %v389
        %v391 = vrot.slane %v297, 2
        %v392 = vsel %vm364, %v389, %v391
        %v393 = vrot.slane %v298, 2
        %v394 = vsel %vm364, %v391, %v393
        %v397 = vsel %vm364, %v378, 0.0
        %v398 = vsel %vm364, %v393, 0.0
        %399 = vrot.lane.b32.xlu0 %v283, 4
        %v400 = vpop.permute.xlu0 %399
        %401 = vrot.lane.b32.xlu0 %v284, 4
        %v402 = vpop.permute.xlu0 %401
        %403 = vrot.lane.b32.xlu0 %v285, 4
        %v404 = vpop.permute.xlu0 %403
        %405 = vrot.lane.b32.xlu0 %v286, 4
        %v406 = vpop.permute.xlu0 %405
        %407 = vrot.lane.b32.xlu0 %v287, 4
        %v408 = vpop.permute.xlu0 %407
        %409 = vrot.lane.b32.xlu0 %v288, 4
        %v410 = vpop.permute.xlu0 %409
        %411 = vrot.lane.b32.xlu0 %v289, 4
        %v412 = vpop.permute.xlu0 %411
        %413 = vrot.lane.b32.xlu0 %v290, 4
        %v414 = vpop.permute.xlu0 %413
        %415 = vrot.lane.b32.xlu0 %v291, 4
        %v416 = vpop.permute.xlu0 %415
        %417 = vrot.lane.b32.xlu0 %v292, 4
        %v418 = vpop.permute.xlu0 %417
        %419 = vrot.lane.b32.xlu0 %v293, 4
        %v420 = vpop.permute.xlu0 %419
        %421 = vrot.lane.b32.xlu0 %v294, 4
        %v422 = vpop.permute.xlu0 %421
        %423 = vrot.lane.b32.xlu0 %v295, 4
        %v424 = vpop.permute.xlu0 %423
        %425 = vrot.lane.b32.xlu0 %v296, 4
        %v426 = vpop.permute.xlu0 %425
        %427 = vrot.lane.b32.xlu0 %v297, 4
        %v428 = vpop.permute.xlu0 %427
        %429 = vrot.lane.b32.xlu0 %v298, 4
        %v430 = vpop.permute.xlu0 %429
        %449 = vrot.lane.b32.xlu0 %v367, 8
        %v450 = vpop.permute.xlu0 %449
        %451 = vrot.lane.b32.xlu0 %v369, 8
        %v452 = vpop.permute.xlu0 %451
        %453 = vrot.lane.b32.xlu0 %v371, 8
        %v454 = vpop.permute.xlu0 %453
        %455 = vrot.lane.b32.xlu0 %v373, 8
        %v456 = vpop.permute.xlu0 %455
        %457 = vrot.lane.b32.xlu0 %v375, 8
        %v458 = vpop.permute.xlu0 %457
        %459 = vrot.lane.b32.xlu0 %v377, 8
        %v460 = vpop.permute.xlu0 %459
        %461 = vrot.lane.b32.xlu0 %v379, 8
        %v462 = vpop.permute.xlu0 %461
        %463 = vrot.lane.b32.xlu0 %v397, 8
        %v464 = vpop.permute.xlu0 %463
        %465 = vrot.lane.b32.xlu0 %v382, 8
        %v466 = vpop.permute.xlu0 %465
        %467 = vrot.lane.b32.xlu0 %v384, 8
        %v468 = vpop.permute.xlu0 %467
        %469 = vrot.lane.b32.xlu0 %v386, 8
        %v470 = vpop.permute.xlu0 %469
        %471 = vrot.lane.b32.xlu0 %v388, 8
        %v472 = vpop.permute.xlu0 %471
        %473 = vrot.lane.b32.xlu0 %v390, 8
        %v474 = vpop.permute.xlu0 %473
        %475 = vrot.lane.b32.xlu0 %v392, 8
        %v476 = vpop.permute.xlu0 %475
        %477 = vrot.lane.b32.xlu0 %v394, 8
        %v478 = vpop.permute.xlu0 %477
        %479 = vrot.lane.b32.xlu0 %v398, 8
        %v480 = vpop.permute.xlu0 %479
        %vm497 = vcmask 31744
        %v498 = vsel %vm497, %v362, %v400
        %v499 = vsel %vm497, %v318, %v402
        %v500 = vsel %vm497, %v320, %v404
        %v501 = vsel %vm497, %v322, %v406
        %v502 = vsel %vm497, %v324, %v408
        %v503 = vsel %vm497, %v326, %v410
        %v504 = vsel %vm497, %v328, %v412
        %v505 = vsel %vm497, %v330, %v414
        %v506 = vsel %vm497, %v363, %v416
        %v507 = vsel %vm497, %v333, %v418
        %v508 = vsel %vm497, %v335, %v420
        %v509 = vsel %vm497, %v337, %v422
        %v510 = vsel %vm497, %v339, %v424
        %v511 = vsel %vm497, %v341, %v426
        %v512 = vsel %vm497, %v343, %v428
        %v513 = vsel %vm497, %v345, %v430
        %vm514 = vcmask 64512
        %v515 = vsel %vm514, %v498, %v450
        %v516 = vsel %vm514, %v499, %v452
        %v517 = vsel %vm514, %v500, %v454
        %v518 = vsel %vm514, %v501, %v456
        %v519 = vsel %vm514, %v502, %v458
        %v520 = vsel %vm514, %v503, %v460
        %v521 = vsel %vm514, %v504, %v462
        %v522 = vsel %vm514, %v505, %v464
        %v523 = vsel %vm514, %v506, %v466
        %v524 = vsel %vm514, %v507, %v468
        %v525 = vsel %vm514, %v508, %v470
        %v526 = vsel %vm514, %v509, %v472
        %v527 = vsel %vm514, %v510, %v474
        %v528 = vsel %vm514, %v511, %v476
        %v529 = vsel %vm514, %v512, %v478
        %v530 = vsel %vm514, %v513, %v480
        %v531 = vld [vmem:[%s1] sm:$0xff]
        %v532 = vld [vmem:[%s1 + $0x8] sm:$0xf]
        %v533 = vld [vmem:[%s2] sm:$0x1]
        %v535 = vperm.slane %v533, 0
        %vm537 = vcmask 97280
        %v539 = vsel %vm537, %v515, 0
        %v542 = vsel %vm537, %v516, 0
        %v545 = vsel %vm537, %v517, 0
        %v548 = vsel %vm537, %v518, 0
        %v551 = vsel %vm537, %v519, 0
        %v554 = vsel %vm537, %v520, 0
        %v557 = vsel %vm537, %v521, 0
        %v560 = vsel %vm537, %v522, 0
        %v563 = vsel %vm537, %v523, 0
        %v566 = vsel %vm537, %v524, 0
        %v569 = vsel %vm537, %v525, 0
        %v572 = vsel %vm537, %v526, 0
        %v575 = vsel %vm537, %v527, 0
        %v578 = vsel %vm537, %v528, 0
        %v581 = vsel %vm537, %v529, 0
        %v584 = vsel %vm537, %v530, 0
        %vm586 = vcmask 1043456
        %v588 = vsel %vm586, %v532, 0
        %590 = vmatpush.msra.mxu0 0.0
        %591 = vmatpush.msra.mxu0 0.0
        %592 = vmatpush.msra.mxu0 0.0
        %593 = vmatpush.msra.mxu0 0.0
        %594 = vmatpush.msra.mxu0 0.0
        %595 = vmatpush.msra.mxu0 0.0
        %596 = vmatpush.msra.mxu0 0.0
        %597 = vmatpush.msra.mxu0 0.0
        %598 = vmatpush.msra.mxu0 0.0
        %599 = vmatpush.msra.mxu0 0.0
        %600 = vmatpush.msra.mxu0 0.0
        %601 = vmatpush.msra.mxu0 0.0
        %602 = vmatpush.msra.mxu0 0.0
        %603 = vmatpush.msra.mxu0 0.0
        %604 = vmatpush.msra.mxu0 %v588
        %605 = vmatpush.msra.mxu0 %v531
        %606 = vmatmul.f32.gmra.mxu0 %v539
        %v607 = vpop.f32.mrf.mxu0
        %v608 = vadd.f32 %v535, %v607
        %609 = vmatmul.f32.gmra.mxu0 %v542
        %v610 = vpop.f32.mrf.mxu0
        %v611 = vadd.f32 %v535, %v610
        %612 = vmatmul.f32.gmra.mxu0 %v545
        %v613 = vpop.f32.mrf.mxu0
        %v614 = vadd.f32 %v535, %v613
        %615 = vmatmul.f32.gmra.mxu0 %v548
        %v616 = vpop.f32.mrf.mxu0
        %v617 = vadd.f32 %v535, %v616
        %618 = vmatmul.f32.gmra.mxu0 %v551
        %v619 = vpop.f32.mrf.mxu0
        %v620 = vadd.f32 %v535, %v619
        %621 = vmatmul.f32.gmra.mxu0 %v554
        %v622 = vpop.f32.mrf.mxu0
        %v623 = vadd.f32 %v535, %v622
        %624 = vmatmul.f32.gmra.mxu0 %v557
        %v625 = vpop.f32.mrf.mxu0
        %v626 = vadd.f32 %v535, %v625
        %627 = vmatmul.f32.gmra.mxu0 %v560
        %v628 = vpop.f32.mrf.mxu0
        %v629 = vadd.f32 %v535, %v628
        %630 = vmatmul.f32.gmra.mxu0 %v563
        %v631 = vpop.f32.mrf.mxu0
        %v632 = vadd.f32 %v535, %v631
        %633 = vmatmul.f32.gmra.mxu0 %v566
        %v634 = vpop.f32.mrf.mxu0
        %v635 = vadd.f32 %v535, %v634
        %636 = vmatmul.f32.gmra.mxu0 %v569
        %v637 = vpop.f32.mrf.mxu0
        %v638 = vadd.f32 %v535, %v637
        %639 = vmatmul.f32.gmra.mxu0 %v572
        %v640 = vpop.f32.mrf.mxu0
        %v641 = vadd.f32 %v535, %v640
        %642 = vmatmul.f32.gmra.mxu0 %v575
        %v643 = vpop.f32.mrf.mxu0
        %v644 = vadd.f32 %v535, %v643
        %645 = vmatmul.f32.gmra.mxu0 %v578
        %v646 = vpop.f32.mrf.mxu0
        %v647 = vadd.f32 %v535, %v646
        %648 = vmatmul.f32.gmra.mxu0 %v581
        %v649 = vpop.f32.mrf.mxu0
        %v650 = vadd.f32 %v535, %v649
        %651 = vmatmul.f32.gmra.mxu0 %v584
        %v652 = vpop.f32.mrf.mxu0
        %v653 = vadd.f32 %v535, %v652
        %654 = vdwg.mxu0
        %v655 = vmax.f32 %v608, 0.0
        %v656 = vmax.f32 %v611, 0.0
        %v657 = vmax.f32 %v614, 0.0
        %v658 = vmax.f32 %v617, 0.0
        %v659 = vmax.f32 %v620, 0.0
        %v660 = vmax.f32 %v623, 0.0
        %v661 = vmax.f32 %v626, 0.0
        %v662 = vmax.f32 %v629, 0.0
        %v663 = vmax.f32 %v632, 0.0
        %v664 = vmax.f32 %v635, 0.0
        %v665 = vmax.f32 %v638, 0.0
        %v666 = vmax.f32 %v641, 0.0
        %v667 = vmax.f32 %v644, 0.0
        %v668 = vmax.f32 %v647, 0.0
        %v669 = vmax.f32 %v650, 0.0
        %v670 = vmax.f32 %v653, 0.0
        %v687 = vrot.slane %v655, 6
        %v688 = vrot.slane %v656, 6
        %v689 = vsel %vm315, %v687, %v688
        %v690 = vrot.slane %v657, 6
        %v691 = vsel %vm315, %v688, %v690
        %v692 = vrot.slane %v658, 6
        %v693 = vsel %vm315, %v690, %v692
        %v694 = vrot.slane %v659, 6
        %v695 = vsel %vm315, %v692, %v694
        %v696 = vrot.slane %v660, 6
        %v697 = vsel %vm315, %v694, %v696
        %v698 = vrot.slane %v661, 6
        %v699 = vsel %vm315, %v696, %v698
        %v700 = vrot.slane %v662, 6
        %v701 = vsel %vm315, %v698, %v700
        %v702 = vrot.slane %v663, 6
        %v703 = vrot.slane %v664, 6
        %v704 = vsel %vm315, %v702, %v703
        %v705 = vrot.slane %v665, 6
        %v706 = vsel %vm315, %v703, %v705
        %v707 = vrot.slane %v666, 6
        %v708 = vsel %vm315, %v705, %v707
        %v709 = vrot.slane %v667, 6
        %v710 = vsel %vm315, %v707, %v709
        %v711 = vrot.slane %v668, 6
        %v712 = vsel %vm315, %v709, %v711
        %v713 = vrot.slane %v669, 6
        %v714 = vsel %vm315, %v711, %v713
        %v715 = vrot.slane %v670, 6
        %v716 = vsel %vm315, %v713, %v715
        %v735 = vsel %vm315, 0.0, %v687
        %v736 = vsel %vm315, 0.0, %v702
        %v737 = vsel %vm315, %v700, 0.0
        %v738 = vsel %vm315, %v715, 0.0
        %v739 = vld [vmem:[%s3] sm:$0xff]
        %v740 = vld [vmem:[%s3 + $0x8] sm:$0xff]
        %v741 = vld [vmem:[%s3 + $0x10] sm:$0xff]
        %v742 = vld [vmem:[%s3 + $0x18] sm:$0xff]
        %v743 = vld [vmem:[%s3 + $0x20] sm:$0xff]
        %v744 = vld [vmem:[%s3 + $0x28] sm:$0xff]
        %v745 = vld [vmem:[%s3 + $0x30] sm:$0xff]
        %v746 = vld [vmem:[%s3 + $0x38] sm:$0xff]
        %v747 = vld [vmem:[%s3 + $0x40] sm:$0xff]
        %v748 = vld [vmem:[%s3 + $0x48] sm:$0xff]
        %v749 = vld [vmem:[%s3 + $0x50] sm:$0xff]
        %v750 = vld [vmem:[%s3 + $0x58] sm:$0xff]
        %v751 = vld [vmem:[%s3 + $0x60] sm:$0xff]
        %v752 = vld [vmem:[%s3 + $0x68] sm:$0xff]
        %v753 = vld [vmem:[%s3 + $0x70] sm:$0xff]
        %v754 = vld [vmem:[%s3 + $0x78] sm:$0xff]
        %v759 = vrot.slane %v735, 2
        %v760 = vrot.slane %v689, 2
        %v761 = vsel %vm364, %v759, %v760
        %v762 = vrot.slane %v691, 2
        %v763 = vsel %vm364, %v760, %v762
        %v764 = vrot.slane %v693, 2
        %v765 = vsel %vm364, %v762, %v764
        %v766 = vrot.slane %v695, 2
        %v767 = vsel %vm364, %v764, %v766
        %v768 = vrot.slane %v697, 2
        %v769 = vsel %vm364, %v766, %v768
        %v770 = vrot.slane %v699, 2
        %v771 = vsel %vm364, %v768, %v770
        %v772 = vrot.slane %v701, 2
        %v773 = vsel %vm364, %v770, %v772
        %v774 = vrot.slane %v737, 2
        %v775 = vsel %vm364, %v772, %v774
        %v776 = vrot.slane %v736, 2
        %v777 = vrot.slane %v704, 2
        %v778 = vsel %vm364, %v776, %v777
        %v779 = vrot.slane %v706, 2
        %v780 = vsel %vm364, %v777, %v779
        %v781 = vrot.slane %v708, 2
        %v782 = vsel %vm364, %v779, %v781
        %v783 = vrot.slane %v710, 2
        %v784 = vsel %vm364, %v781, %v783
        %v785 = vrot.slane %v712, 2
        %v786 = vsel %vm364, %v783, %v785
        %v787 = vrot.slane %v714, 2
        %v788 = vsel %vm364, %v785, %v787
        %v789 = vrot.slane %v716, 2
        %v790 = vsel %vm364, %v787, %v789
        %v791 = vrot.slane %v738, 2
        %v792 = vsel %vm364, %v789, %v791
        %v809 = vld [vmem:[%s3 + $0x80] sm:$0xff]
        %v810 = vld [vmem:[%s3 + $0x88] sm:$0xff]
        %v811 = vld [vmem:[%s3 + $0x90] sm:$0xff]
        %v812 = vld [vmem:[%s3 + $0x98] sm:$0xff]
        %v813 = vld [vmem:[%s3 + $0xa0] sm:$0xff]
        %v814 = vld [vmem:[%s3 + $0xa8] sm:$0xff]
        %v815 = vld [vmem:[%s3 + $0xb0] sm:$0xff]
        %v816 = vld [vmem:[%s3 + $0xb8] sm:$0xff]
        %v817 = vld [vmem:[%s3 + $0xc0] sm:$0xff]
        %v818 = vld [vmem:[%s3 + $0xc8] sm:$0xff]
        %v819 = vld [vmem:[%s3 + $0xd0] sm:$0xff]
        %v820 = vld [vmem:[%s3 + $0xd8] sm:$0xff]
        %v821 = vld [vmem:[%s3 + $0xe0] sm:$0xff]
        %v822 = vld [vmem:[%s3 + $0xe8] sm:$0xff]
        %v823 = vld [vmem:[%s3 + $0xf0] sm:$0xff]
        %v824 = vld [vmem:[%s3 + $0xf8] sm:$0xff]
        %825 = vmatpush.msra.mxu0 %v824
        %826 = vmatpush.msra.mxu0 %v823
        %827 = vmatpush.msra.mxu0 %v822
        %828 = vmatpush.msra.mxu0 %v821
        %829 = vmatpush.msra.mxu0 %v820
        %830 = vmatpush.msra.mxu0 %v819
        %831 = vmatpush.msra.mxu0 %v818
        %832 = vmatpush.msra.mxu0 %v817
        %833 = vmatpush.msra.mxu0 %v816
        %834 = vmatpush.msra.mxu0 %v815
        %835 = vmatpush.msra.mxu0 %v814
        %836 = vmatpush.msra.mxu0 %v813
        %837 = vmatpush.msra.mxu0 %v812
        %838 = vmatpush.msra.mxu0 %v811
        %839 = vmatpush.msra.mxu0 %v810
        %840 = vmatpush.msra.mxu0 %v809
        %841 = vmatmul.f32.gmra.mxu0 %v761
        %v842 = vpop.f32.mrf.mxu0
        %v843 = vadd.f32 0.0, %v842
        %844 = vmatmul.f32.gmra.mxu0 %v763
        %v845 = vpop.f32.mrf.mxu0
        %v846 = vadd.f32 0.0, %v845
        %847 = vmatmul.f32.gmra.mxu0 %v765
        %v848 = vpop.f32.mrf.mxu0
        %v849 = vadd.f32 0.0, %v848
        %850 = vmatmul.f32.gmra.mxu0 %v767
        %v851 = vpop.f32.mrf.mxu0
        %v852 = vadd.f32 0.0, %v851
        %853 = vmatmul.f32.gmra.mxu0 %v769
        %v854 = vpop.f32.mrf.mxu0
        %v855 = vadd.f32 0.0, %v854
        %856 = vmatmul.f32.gmra.mxu0 %v771
        %v857 = vpop.f32.mrf.mxu0
        %v858 = vadd.f32 0.0, %v857
        %859 = vmatmul.f32.gmra.mxu0 %v773
        %v860 = vpop.f32.mrf.mxu0
        %v861 = vadd.f32 0.0, %v860
        %862 = vmatmul.f32.gmra.mxu0 %v775
        %v863 = vpop.f32.mrf.mxu0
        %v864 = vadd.f32 0.0, %v863
        %865 = vmatmul.f32.gmra.mxu0 %v778
        %v866 = vpop.f32.mrf.mxu0
        %v867 = vadd.f32 0.0, %v866
        %868 = vmatmul.f32.gmra.mxu0 %v780
        %v869 = vpop.f32.mrf.mxu0
        %v870 = vadd.f32 0.0, %v869
        %871 = vmatmul.f32.gmra.mxu0 %v782
        %v872 = vpop.f32.mrf.mxu0
        %v873 = vadd.f32 0.0, %v872
        %874 = vmatmul.f32.gmra.mxu0 %v784
        %v875 = vpop.f32.mrf.mxu0
        %v876 = vadd.f32 0.0, %v875
        %877 = vmatmul.f32.gmra.mxu0 %v786
        %v878 = vpop.f32.mrf.mxu0
        %v879 = vadd.f32 0.0, %v878
        %880 = vmatmul.f32.gmra.mxu0 %v788
        %v881 = vpop.f32.mrf.mxu0
        %v882 = vadd.f32 0.0, %v881
        %883 = vmatmul.f32.gmra.mxu0 %v790
        %v884 = vpop.f32.mrf.mxu0
        %v885 = vadd.f32 0.0, %v884
        %886 = vmatmul.f32.gmra.mxu0 %v792
        %v887 = vpop.f32.mrf.mxu0
        %v888 = vadd.f32 0.0, %v887
        %889 = vdwg.mxu0
        %890 = vmatpush.msra.mxu0 %v754
        %891 = vmatpush.msra.mxu0 %v753
        %892 = vmatpush.msra.mxu0 %v752
        %893 = vmatpush.msra.mxu0 %v751
        %894 = vmatpush.msra.mxu0 %v750
        %895 = vmatpush.msra.mxu0 %v749
        %896 = vmatpush.msra.mxu0 %v748
        %897 = vmatpush.msra.mxu0 %v747
        %898 = vmatpush.msra.mxu0 %v746
        %899 = vmatpush.msra.mxu0 %v745
        %900 = vmatpush.msra.mxu0 %v744
        %901 = vmatpush.msra.mxu0 %v743
        %902 = vmatpush.msra.mxu0 %v742
        %903 = vmatpush.msra.mxu0 %v741
        %904 = vmatpush.msra.mxu0 %v740
        %905 = vmatpush.msra.mxu0 %v739
        %906 = vmatmul.f32.gmra.mxu0 %v735
        %v907 = vpop.f32.mrf.mxu0
        %v908 = vadd.f32 %v843, %v907
        %909 = vmatmul.f32.gmra.mxu0 %v689
        %v910 = vpop.f32.mrf.mxu0
        %v911 = vadd.f32 %v846, %v910
        %912 = vmatmul.f32.gmra.mxu0 %v691
        %v913 = vpop.f32.mrf.mxu0
        %v914 = vadd.f32 %v849, %v913
        %915 = vmatmul.f32.gmra.mxu0 %v693
        %v916 = vpop.f32.mrf.mxu0
        %v917 = vadd.f32 %v852, %v916
        %918 = vmatmul.f32.gmra.mxu0 %v695
        %v919 = vpop.f32.mrf.mxu0
        %v920 = vadd.f32 %v855, %v919
        %921 = vmatmul.f32.gmra.mxu0 %v697
        %v922 = vpop.f32.mrf.mxu0
        %v923 = vadd.f32 %v858, %v922
        %924 = vmatmul.f32.gmra.mxu0 %v699
        %v925 = vpop.f32.mrf.mxu0
        %v926 = vadd.f32 %v861, %v925
        %927 = vmatmul.f32.gmra.mxu0 %v701
        %v928 = vpop.f32.mrf.mxu0
        %v929 = vadd.f32 %v864, %v928
        %930 = vmatmul.f32.gmra.mxu0 %v736
        %v931 = vpop.f32.mrf.mxu0
        %v932 = vadd.f32 %v867, %v931
        %933 = vmatmul.f32.gmra.mxu0 %v704
        %v934 = vpop.f32.mrf.mxu0
        %v935 = vadd.f32 %v870, %v934
        %936 = vmatmul.f32.gmra.mxu0 %v706
        %v937 = vpop.f32.mrf.mxu0
        %v938 = vadd.f32 %v873, %v937
        %939 = vmatmul.f32.gmra.mxu0 %v708
        %v940 = vpop.f32.mrf.mxu0
        %v941 = vadd.f32 %v876, %v940
        %942 = vmatmul.f32.gmra.mxu0 %v710
        %v943 = vpop.f32.mrf.mxu0
        %v944 = vadd.f32 %v879, %v943
        %945 = vmatmul.f32.gmra.mxu0 %v712
        %v946 = vpop.f32.mrf.mxu0
        %v947 = vadd.f32 %v882, %v946
        %948 = vmatmul.f32.gmra.mxu0 %v714
        %v949 = vpop.f32.mrf.mxu0
        %v950 = vadd.f32 %v885, %v949
        %951 = vmatmul.f32.gmra.mxu0 %v716
        %v952 = vpop.f32.mrf.mxu0
        %v953 = vadd.f32 %v888, %v952
        %954 = vdwg.mxu0
        %v955 = vrot.slane %v735, 4
        %v956 = vrot.slane %v689, 4
        %v957 = vsel %vm586, %v955, %v956
        %v958 = vrot.slane %v691, 4
        %v959 = vsel %vm586, %v956, %v958
        %v960 = vrot.slane %v693, 4
        %v961 = vsel %vm586, %v958, %v960
        %v962 = vrot.slane %v695, 4
        %v963 = vsel %vm586, %v960, %v962
        %v964 = vrot.slane %v697, 4
        %v965 = vsel %vm586, %v962, %v964
        %v966 = vrot.slane %v699, 4
        %v967 = vsel %vm586, %v964, %v966
        %v968 = vrot.slane %v701, 4
        %v969 = vsel %vm586, %v966, %v968
        %v970 = vrot.slane %v737, 4
        %v971 = vsel %vm586, %v968, %v970
        %v972 = vrot.slane %v736, 4
        %v973 = vrot.slane %v704, 4
        %v974 = vsel %vm586, %v972, %v973
        %v975 = vrot.slane %v706, 4
        %v976 = vsel %vm586, %v973, %v975
        %v977 = vrot.slane %v708, 4
        %v978 = vsel %vm586, %v975, %v977
        %v979 = vrot.slane %v710, 4
        %v980 = vsel %vm586, %v977, %v979
        %v981 = vrot.slane %v712, 4
        %v982 = vsel %vm586, %v979, %v981
        %v983 = vrot.slane %v714, 4
        %v984 = vsel %vm586, %v981, %v983
        %v985 = vrot.slane %v716, 4
        %v986 = vsel %vm586, %v983, %v985
        %v987 = vrot.slane %v738, 4
        %v988 = vsel %vm586, %v985, %v987
        %v1005 = vld [vmem:[%s3 + $0x100] sm:$0xff]
        %v1006 = vld [vmem:[%s3 + $0x108] sm:$0xff]
        %v1007 = vld [vmem:[%s3 + $0x110] sm:$0xff]
        %v1008 = vld [vmem:[%s3 + $0x118] sm:$0xff]
        %v1009 = vld [vmem:[%s3 + $0x120] sm:$0xff]
        %v1010 = vld [vmem:[%s3 + $0x128] sm:$0xff]
        %v1011 = vld [vmem:[%s3 + $0x130] sm:$0xff]
        %v1012 = vld [vmem:[%s3 + $0x138] sm:$0xff]
        %v1013 = vld [vmem:[%s3 + $0x140] sm:$0xff]
        %v1014 = vld [vmem:[%s3 + $0x148] sm:$0xff]
        %v1015 = vld [vmem:[%s3 + $0x150] sm:$0xff]
        %v1016 = vld [vmem:[%s3 + $0x158] sm:$0xff]
        %v1017 = vld [vmem:[%s3 + $0x160] sm:$0xff]
        %v1018 = vld [vmem:[%s3 + $0x168] sm:$0xff]
        %v1019 = vld [vmem:[%s3 + $0x170] sm:$0xff]
        %v1020 = vld [vmem:[%s3 + $0x178] sm:$0xff]
        %1021 = vmatpush.msra.mxu0 %v1020
        %1022 = vmatpush.msra.mxu0 %v1019
        %1023 = vmatpush.msra.mxu0 %v1018
        %1024 = vmatpush.msra.mxu0 %v1017
        %1025 = vmatpush.msra.mxu0 %v1016
        %1026 = vmatpush.msra.mxu0 %v1015
        %1027 = vmatpush.msra.mxu0 %v1014
        %1028 = vmatpush.msra.mxu0 %v1013
        %1029 = vmatpush.msra.mxu0 %v1012
        %1030 = vmatpush.msra.mxu0 %v1011
        %1031 = vmatpush.msra.mxu0 %v1010
        %1032 = vmatpush.msra.mxu0 %v1009
        %1033 = vmatpush.msra.mxu0 %v1008
        %1034 = vmatpush.msra.mxu0 %v1007
        %1035 = vmatpush.msra.mxu0 %v1006
        %1036 = vmatpush.msra.mxu0 %v1005
        %1037 = vmatmul.f32.gmra.mxu0 %v957
        %v1038 = vpop.f32.mrf.mxu0
        %v1039 = vadd.f32 0.0, %v1038
        %1040 = vmatmul.f32.gmra.mxu0 %v959
        %v1041 = vpop.f32.mrf.mxu0
        %v1042 = vadd.f32 0.0, %v1041
        %1043 = vmatmul.f32.gmra.mxu0 %v961
        %v1044 = vpop.f32.mrf.mxu0
        %v1045 = vadd.f32 0.0, %v1044
        %1046 = vmatmul.f32.gmra.mxu0 %v963
        %v1047 = vpop.f32.mrf.mxu0
        %v1048 = vadd.f32 0.0, %v1047
        %1049 = vmatmul.f32.gmra.mxu0 %v965
        %v1050 = vpop.f32.mrf.mxu0
        %v1051 = vadd.f32 0.0, %v1050
        %1052 = vmatmul.f32.gmra.mxu0 %v967
        %v1053 = vpop.f32.mrf.mxu0
        %v1054 = vadd.f32 0.0, %v1053
        %1055 = vmatmul.f32.gmra.mxu0 %v969
        %v1056 = vpop.f32.mrf.mxu0
        %v1057 = vadd.f32 0.0, %v1056
        %1058 = vmatmul.f32.gmra.mxu0 %v971
        %v1059 = vpop.f32.mrf.mxu0
        %v1060 = vadd.f32 0.0, %v1059
        %1061 = vmatmul.f32.gmra.mxu0 %v974
        %v1062 = vpop.f32.mrf.mxu0
        %v1063 = vadd.f32 0.0, %v1062
        %1064 = vmatmul.f32.gmra.mxu0 %v976
        %v1065 = vpop.f32.mrf.mxu0
        %v1066 = vadd.f32 0.0, %v1065
        %1067 = vmatmul.f32.gmra.mxu0 %v978
        %v1068 = vpop.f32.mrf.mxu0
        %v1069 = vadd.f32 0.0, %v1068
        %1070 = vmatmul.f32.gmra.mxu0 %v980
        %v1071 = vpop.f32.mrf.mxu0
        %v1072 = vadd.f32 0.0, %v1071
        %1073 = vmatmul.f32.gmra.mxu0 %v982
        %v1074 = vpop.f32.mrf.mxu0
        %v1075 = vadd.f32 0.0, %v1074
        %1076 = vmatmul.f32.gmra.mxu0 %v984
        %v1077 = vpop.f32.mrf.mxu0
        %v1078 = vadd.f32 0.0, %v1077
        %1079 = vmatmul.f32.gmra.mxu0 %v986
        %v1080 = vpop.f32.mrf.mxu0
        %v1081 = vadd.f32 0.0, %v1080
        %1082 = vmatmul.f32.gmra.mxu0 %v988
        %v1083 = vpop.f32.mrf.mxu0
        %v1084 = vadd.f32 0.0, %v1083
        %1085 = vdwg.mxu0
        %v1086 = vadd.f32 %v908, %v1039
        %v1087 = vadd.f32 %v911, %v1042
        %v1088 = vadd.f32 %v914, %v1045
        %v1089 = vadd.f32 %v917, %v1048
        %v1090 = vadd.f32 %v920, %v1051
        %v1091 = vadd.f32 %v923, %v1054
        %v1092 = vadd.f32 %v926, %v1057
        %v1093 = vadd.f32 %v929, %v1060
        %v1094 = vadd.f32 %v932, %v1063
        %v1095 = vadd.f32 %v935, %v1066
        %v1096 = vadd.f32 %v938, %v1069
        %v1097 = vadd.f32 %v941, %v1072
        %v1098 = vadd.f32 %v944, %v1075
        %v1099 = vadd.f32 %v947, %v1078
        %v1100 = vadd.f32 %v950, %v1081
        %v1101 = vadd.f32 %v953, %v1084
        %v1102 = vld [vmem:[%s4] sm:$0x1]
        %v1104 = vperm.slane %v1102, 0
        %v1106 = vadd.f32 %v1086, %v1104
        %v1107 = vadd.f32 %v1087, %v1104
        %v1108 = vadd.f32 %v1088, %v1104
        %v1109 = vadd.f32 %v1089, %v1104
        %v1110 = vadd.f32 %v1090, %v1104
        %v1111 = vadd.f32 %v1091, %v1104
        %v1112 = vadd.f32 %v1092, %v1104
        %v1113 = vadd.f32 %v1093, %v1104
        %v1114 = vadd.f32 %v1094, %v1104
        %v1115 = vadd.f32 %v1095, %v1104
        %v1116 = vadd.f32 %v1096, %v1104
        %v1117 = vadd.f32 %v1097, %v1104
        %v1118 = vadd.f32 %v1098, %v1104
        %v1119 = vadd.f32 %v1099, %v1104
        %v1120 = vadd.f32 %v1100, %v1104
        %v1121 = vadd.f32 %v1101, %v1104
        %v1122 = vmax.f32 %v1106, 0.0
        %v1123 = vmax.f32 %v1107, 0.0
        %v1124 = vmax.f32 %v1108, 0.0
        %v1125 = vmax.f32 %v1109, 0.0
        %v1126 = vmax.f32 %v1110, 0.0
        %v1127 = vmax.f32 %v1111, 0.0
        %v1128 = vmax.f32 %v1112, 0.0
        %v1129 = vmax.f32 %v1113, 0.0
        %v1130 = vmax.f32 %v1114, 0.0
        %v1131 = vmax.f32 %v1115, 0.0
        %v1132 = vmax.f32 %v1116, 0.0
        %v1133 = vmax.f32 %v1117, 0.0
        %v1134 = vmax.f32 %v1118, 0.0
        %v1135 = vmax.f32 %v1119, 0.0
        %v1136 = vmax.f32 %v1120, 0.0
        %v1137 = vmax.f32 %v1121, 0.0
        %v1138 = vld [vmem:[%s5] sm:$0xf]
        %v1139 = vld [vmem:[%s6] sm:$0x1]
        %v1141 = vperm.slane %v1139, 0
        %v1143 = vsel %vm497, %v283, 0
        %v1145 = vsel %vm497, %v284, 0
        %v1147 = vsel %vm497, %v285, 0
        %v1149 = vsel %vm497, %v286, 0
        %v1151 = vsel %vm497, %v287, 0
        %v1153 = vsel %vm497, %v288, 0
        %v1155 = vsel %vm497, %v289, 0
        %v1157 = vsel %vm497, %v290, 0
        %v1159 = vsel %vm497, %v291, 0
        %v1161 = vsel %vm497, %v292, 0
        %v1163 = vsel %vm497, %v293, 0
        %v1165 = vsel %vm497, %v294, 0
        %v1167 = vsel %vm497, %v295, 0
        %v1169 = vsel %vm497, %v296, 0
        %v1171 = vsel %vm497, %v297, 0
        %v1173 = vsel %vm497, %v298, 0
        %v1176 = vsel %vm586, %v1138, 0
        %1178 = vmatpush.msra.mxu0 0.0
        %1179 = vmatpush.msra.mxu0 0.0
        %1180 = vmatpush.msra.mxu0 0.0
        %1181 = vmatpush.msra.mxu0 0.0
        %1182 = vmatpush.msra.mxu0 0.0
        %1183 = vmatpush.msra.mxu0 0.0
        %1184 = vmatpush.msra.mxu0 0.0
        %1185 = vmatpush.msra.mxu0 0.0
        %1186 = vmatpush.msra.mxu0 0.0
        %1187 = vmatpush.msra.mxu0 0.0
        %1188 = vmatpush.msra.mxu0 0.0
        %1189 = vmatpush.msra.mxu0 0.0
        %1190 = vmatpush.msra.mxu0 0.0
        %1191 = vmatpush.msra.mxu0 0.0
        %1192 = vmatpush.msra.mxu0 0.0
        %1193 = vmatpush.msra.mxu0 %v1176
        %1194 = vmatmul.f32.gmra.mxu0 %v1143
        %v1195 = vpop.f32.mrf.mxu0
        %v1196 = vadd.f32 %v1141, %v1195
        %1197 = vmatmul.f32.gmra.mxu0 %v1145
        %v1198 = vpop.f32.mrf.mxu0
        %v1199 = vadd.f32 %v1141, %v1198
        %1200 = vmatmul.f32.gmra.mxu0 %v1147
        %v1201 = vpop.f32.mrf.mxu0
        %v1202 = vadd.f32 %v1141, %v1201
        %1203 = vmatmul.f32.gmra.mxu0 %v1149
        %v1204 = vpop.f32.mrf.mxu0
        %v1205 = vadd.f32 %v1141, %v1204
        %1206 = vmatmul.f32.gmra.mxu0 %v1151
        %v1207 = vpop.f32.mrf.mxu0
        %v1208 = vadd.f32 %v1141, %v1207
        %1209 = vmatmul.f32.gmra.mxu0 %v1153
        %v1210 = vpop.f32.mrf.mxu0
        %v1211 = vadd.f32 %v1141, %v1210
        %1212 = vmatmul.f32.gmra.mxu0 %v1155
        %v1213 = vpop.f32.mrf.mxu0
        %v1214 = vadd.f32 %v1141, %v1213
        %1215 = vmatmul.f32.gmra.mxu0 %v1157
        %v1216 = vpop.f32.mrf.mxu0
        %v1217 = vadd.f32 %v1141, %v1216
        %1218 = vmatmul.f32.gmra.mxu0 %v1159
        %v1219 = vpop.f32.mrf.mxu0
        %v1220 = vadd.f32 %v1141, %v1219
        %1221 = vmatmul.f32.gmra.mxu0 %v1161
        %v1222 = vpop.f32.mrf.mxu0
        %v1223 = vadd.f32 %v1141, %v1222
        %1224 = vmatmul.f32.gmra.mxu0 %v1163
        %v1225 = vpop.f32.mrf.mxu0
        %v1226 = vadd.f32 %v1141, %v1225
        %1227 = vmatmul.f32.gmra.mxu0 %v1165
        %v1228 = vpop.f32.mrf.mxu0
        %v1229 = vadd.f32 %v1141, %v1228
        %1230 = vmatmul.f32.gmra.mxu0 %v1167
        %v1231 = vpop.f32.mrf.mxu0
        %v1232 = vadd.f32 %v1141, %v1231
        %1233 = vmatmul.f32.gmra.mxu0 %v1169
        %v1234 = vpop.f32.mrf.mxu0
        %v1235 = vadd.f32 %v1141, %v1234
        %1236 = vmatmul.f32.gmra.mxu0 %v1171
        %v1237 = vpop.f32.mrf.mxu0
        %v1238 = vadd.f32 %v1141, %v1237
        %1239 = vmatmul.f32.gmra.mxu0 %v1173
        %v1240 = vpop.f32.mrf.mxu0
        %v1241 = vadd.f32 %v1141, %v1240
        %1242 = vdwg.mxu0
        %v1243 = vadd.f32 %v1122, %v1196
        %v1244 = vadd.f32 %v1123, %v1199
        %v1245 = vadd.f32 %v1124, %v1202
        %v1246 = vadd.f32 %v1125, %v1205
        %v1247 = vadd.f32 %v1126, %v1208
        %v1248 = vadd.f32 %v1127, %v1211
        %v1249 = vadd.f32 %v1128, %v1214
        %v1250 = vadd.f32 %v1129, %v1217
        %v1251 = vadd.f32 %v1130, %v1220
        %v1252 = vadd.f32 %v1131, %v1223
        %v1253 = vadd.f32 %v1132, %v1226
        %v1254 = vadd.f32 %v1133, %v1229
        %v1255 = vadd.f32 %v1134, %v1232
        %v1256 = vadd.f32 %v1135, %v1235
        %v1257 = vadd.f32 %v1136, %v1238
        %v1258 = vadd.f32 %v1137, %v1241
        %v1259 = vmax.f32 %v1243, 0.0
        %v1260 = vmax.f32 %v1244, 0.0
        %v1261 = vmax.f32 %v1245, 0.0
        %v1262 = vmax.f32 %v1246, 0.0
        %v1263 = vmax.f32 %v1247, 0.0
        %v1264 = vmax.f32 %v1248, 0.0
        %v1265 = vmax.f32 %v1249, 0.0
        %v1266 = vmax.f32 %v1250, 0.0
        %v1267 = vmax.f32 %v1251, 0.0
        %v1268 = vmax.f32 %v1252, 0.0
        %v1269 = vmax.f32 %v1253, 0.0
        %v1270 = vmax.f32 %v1254, 0.0
        %v1271 = vmax.f32 %v1255, 0.0
        %v1272 = vmax.f32 %v1256, 0.0
        %v1273 = vmax.f32 %v1257, 0.0
        %v1274 = vmax.f32 %v1258, 0.0
        %1275 = vst [vmem:[%s274] sm:$0xff] %v1259
        %1276 = vst [vmem:[%s274 + $0x8] sm:$0xff] %v1260
        %1277 = vst [vmem:[%s274 + $0x10] sm:$0xff] %v1261
        %1278 = vst [vmem:[%s274 + $0x18] sm:$0xff] %v1262
        %1279 = vst [vmem:[%s274 + $0x20] sm:$0xff] %v1263
        %1280 = vst [vmem:[%s274 + $0x28] sm:$0xff] %v1264
        %1281 = vst [vmem:[%s274 + $0x30] sm:$0xff] %v1265
        %1282 = vst [vmem:[%s274 + $0x38] sm:$0xff] %v1266
        %1283 = vst [vmem:[%s274 + $0x40] sm:$0xff] %v1267
        %1284 = vst [vmem:[%s274 + $0x48] sm:$0xff] %v1268
        %1285 = vst [vmem:[%s274 + $0x50] sm:$0xff] %v1269
        %1286 = vst [vmem:[%s274 + $0x58] sm:$0xff] %v1270
        %1287 = vst [vmem:[%s274 + $0x60] sm:$0xff] %v1271
        %1288 = vst [vmem:[%s274 + $0x68] sm:$0xff] %v1272
        %1289 = vst [vmem:[%s274 + $0x70] sm:$0xff] %v1273
        %1290 = vst [vmem:[%s274 + $0x78] sm:$0xff] %v1274
        %s1291 = sand.u32 %s181, 1
        %s1292 = scalar_lea.sflag [#allocation3], %s1291
        %s1293 = sand.u32 %s181, 1
        %s1294 = smul.addr %s1293, 128
        %s1295 = scalar_lea.vmem [#allocation2], %s1294
        // Predicated region
        $region49: #{tpu_custom_call.1} parent=47 // pred_check
          %p1296 = pneg %p191
        $region50: #{tpu_custom_call.1} parent=47 // pred_check_branch
          %1298 = sbr.rel (%p1296) target = $region52
        $region51: #{tpu_custom_call.1} parent=47 // pred_region
          %s1299 = smul.u32 2, %s21
          %1301 = vsyncadd %s1292, 0
          %s1302 = smul.addr %s1299, 8
          %s1303 = smul.addr %s1302, 8
          %s1304 = scalar_lea.hbm %s7, %s1303
          %s1305 = sshll.u32 %s1295, 4
          %s1306 = int_to_ptr.vmem [resolvable:$true] %s1305
          %s1307 = sshll.u32 %s1304, 4
          %s1308 = int_to_ptr.hbm [resolvable:$true] %s1307
          %1313 = dma.vmem_to_hbm [thread:$0]  %s1306, 2048, %s1308, %s1292, 128, 128, 8
        $region52: #{tpu_custom_call.1} parent=47 // pred_fallthru
          _
      $region48: #{tpu_custom_call.1} parent=5 // pred_fallthru
        _
      %p1314 = scmp.le.s32.totalorder 2, %s16
      // Predicated region
      $region53: #{tpu_custom_call.1} parent=5 // pred_check
        %p1315 = pneg %p1314
      $region54: #{tpu_custom_call.1} parent=5 // pred_check_branch
        %1317 = sbr.rel (%p1315) target = $region56
      $region55: #{tpu_custom_call.1} parent=5 // pred_region
        %s1318 = ssub.s32 %s16, 2
        // Predicated region
        $region57: #{tpu_custom_call.1} parent=55 // pred_check
          %p1319 = pneg %p197
        $region58: #{tpu_custom_call.1} parent=55 // pred_check_branch
          %1321 = sbr.rel (%p1319) target = $region60
        $region59: #{tpu_custom_call.1} parent=55 // pred_region
          %s1322 = sand.u32 %s182, 1
          %s1323 = scalar_lea.sflag [#allocation3], %s1322
          %s1324 = sand.u32 %s182, 1
          %s1325 = smul.addr %s1324, 128
          %s1326 = scalar_lea.vmem [#allocation2], %s1325
          %1328 = dma.done %s1323, 2048
        $region60: #{tpu_custom_call.1} parent=55 // pred_fallthru
          _
      $region56: #{tpu_custom_call.1} parent=5 // pred_fallthru
        _
    $region6: #{tpu_custom_call.1} parent=1 // loop_footer
      %s20 = sadd.s32 1, %s16
    $region7: #{tpu_custom_call.1} parent=1 // loop_footer_branch
      %15 = sbr.rel target = $region3
    $region8: #{tpu_custom_call.1} parent=1 // loop_exit
      _
    %1329 = vsyncpa [#allocation3], 1
    %s1330 = scalar_lea.sflag [#allocation3], 1
    %1331 = vsyncpa %s1330, 1

</llo_original>
